<compile_context>
chip_gen: v7x
topology: tpu7x:2x2x1
jax: 0.10.0
libtpu: 0.0.40
codegen_flags: <defaults>
</compile_context>

<pallas_src>
import math
import functools

import jax
import jax.numpy as jnp
from jax.experimental import pallas as pl
from jax.experimental.pallas import tpu as pltpu


def _jump_gcn_v2_kernel(x_ref, adj_ref, w_in_ref, vecs_ref, wmats_ref, w_head_ref,
                        out_ref, *, num_layers, alpha, ln_eps, hidden, in_feats):
    H = hidden
    F = in_feats
    x = x_ref[...]                          # [N, F] f32
    adj = adj_ref[...]                      # [N, N], pre-scaled by (1 - alpha)

    vecs = vecs_ref[...]                    # [8, H] packed small params (rows)
    b1 = vecs[0:1, :]
    bproj = vecs[1:2, :]
    b2 = vecs[2:3, :]
    g1 = vecs[3:4, :]
    be1 = vecs[4:5, :]
    g2 = vecs[5:6, :]
    be2 = vecs[6:7, :]
    b_head = vecs[7:8, 0:1]                 # [1, 1] = 0.5 * (bpred + b3)

    w_in = w_in_ref[...]                    # [2F, H]: rows [0:F]=w1, [F:2F]=wproj
    # Shared LHS x; sublane-aligned weight slices (no lane shuffles).
    m = jnp.dot(x, w_in[0:F, :], preferred_element_type=jnp.float32) + b1        # MLP pre-act
    h = jnp.dot(x, w_in[F:2 * F, :], preferred_element_type=jnp.float32) + bproj  # GCN proj = h0

    # ---- MLP branch (Linear->ReLU->LN, Linear->ReLU->LN; final Linear fused in head) ----
    inv_h = 1.0 / H
    m = jnp.maximum(m, 0.0)
    mu = jnp.sum(m, axis=-1, keepdims=True) * inv_h
    var = jnp.sum(m * m, axis=-1, keepdims=True) * inv_h - mu * mu
    m = (m - mu) * jax.lax.rsqrt(var + ln_eps) * g1 + be1

    m = jnp.dot(m, wmats_ref[0], preferred_element_type=jnp.float32) + b2
    m = jnp.maximum(m, 0.0)
    mu = jnp.sum(m, axis=-1, keepdims=True) * inv_h
    var = jnp.sum(m * m, axis=-1, keepdims=True) * inv_h - mu * mu
    m = (m - mu) * jax.lax.rsqrt(var + ln_eps) * g2 + be2

    # ---- GCNII branch (theta and (1 - alpha) pre-folded on host) ----
    ah0 = alpha * h                         # hoisted once, reused every layer
    jk = None
    for l in range(1, num_layers + 1):      # unrolled at trace time (static trip count)
        s = jnp.dot(adj, h.astype(adj.dtype),
                    preferred_element_type=jnp.float32) + ah0
        h = jnp.maximum(
            jnp.dot(s, wmats_ref[l], preferred_element_type=jnp.float32), 0.0)
        jk = h if jk is None else jnp.maximum(jk, h)   # JumpingKnowledge 'max'

    # ---- fused head: jk @ (0.5*wpred) + m @ (0.5*w3) + 0.5*(bpred + b3) ----
    w_head = w_head_ref[...]                # [2H, 1]
    out_ref[...] = (
        jnp.dot(jk, w_head[0:H, :], preferred_element_type=jnp.float32)
        + jnp.dot(m, w_head[H:2 * H, :], preferred_element_type=jnp.float32)
        + b_head)


def jump_gcn_v2_forward(x, adj, params, *, num_layers, alpha=0.1, lamda=1.0,
                        ln_eps=1e-5, adj_dtype=jnp.float32):
    """x: [N, F] f32, adj: [N, N] f32 normalized adjacency. Returns [N, 1] f32."""
    n, f = x.shape
    h = params['wproj'].shape[1]

    # ----- one-time host-side algebraic folding / packing -----
    adj_scaled = ((1.0 - alpha) * adj).astype(adj_dtype)

    eye = jnp.eye(h, dtype=jnp.float32)
    folded = []
    for l in range(1, num_layers + 1):
        theta = math.log(lamda / l + 1.0)
        folded.append(theta * params['wgcn'][l - 1] + (1.0 - theta) * eye)
    wmats = jnp.stack([params['w2']] + folded, axis=0)                 # [L+1, H, H]

    # Pack along SUBLANES so in-kernel slices are 8-aligned (no lane rotates).
    w_in = jnp.concatenate([params['w1'], params['wproj']], axis=0)    # [2F, H]
    w_head = jnp.concatenate([0.5 * params['wpred'], 0.5 * params['w3']],
                             axis=0)                                   # [2H, 1]
    b_head = 0.5 * (params['bpred'] + params['b3'])                    # [1, 1]

    vecs = jnp.concatenate([
        params['b1'],                                                  # row 0
        params['bproj'],                                               # row 1
        params['b2'],                                                  # row 2
        params['g1'],                                                  # row 3
        params['be1'],                                                 # row 4
        params['g2'],                                                  # row 5
        params['be2'],                                                 # row 6
        jnp.pad(b_head, ((0, 0), (0, h - 1))),                         # row 7
    ], axis=0)                                                         # [8, H]

    kernel = functools.partial(_jump_gcn_v2_kernel, num_layers=num_layers,
                               alpha=alpha, ln_eps=ln_eps, hidden=h, in_feats=f)
    args = (x, adj_scaled, w_in, vecs, wmats, w_head)
    vmem = pl.BlockSpec(memory_space=pltpu.MemorySpace.VMEM)
    return pl.pallas_call(
        kernel,
        out_shape=jax.ShapeDtypeStruct((n, 1), jnp.float32),
        in_specs=[vmem] * len(args),
        out_specs=vmem,
    )(*args)


def _reference(x, adj, p, *, num_layers, alpha, lamda, ln_eps):
    def ln(v, g, b):
        mu = jnp.mean(v, axis=-1, keepdims=True)
        var = jnp.mean((v - mu) ** 2, axis=-1, keepdims=True)
        return (v - mu) / jnp.sqrt(var + ln_eps) * g + b

    m = jnp.maximum(x @ p['w1'] + p['b1'], 0.0)
    m = ln(m, p['g1'], p['be1'])
    m = jnp.maximum(m @ p['w2'] + p['b2'], 0.0)
    m = ln(m, p['g2'], p['be2'])
    mlp_out = m @ p['w3'] + p['b3']

    h = x @ p['wproj'] + p['bproj']
    h0 = h
    jk = None
    for i in range(num_layers):
        theta = math.log(lamda / (i + 1) + 1.0)
        hi = adj @ h
        s = (1.0 - alpha) * hi + alpha * h0
        h = jnp.maximum(theta * (s @ p['wgcn'][i]) + (1.0 - theta) * s, 0.0)
        jk = h if jk is None else jnp.maximum(jk, h)
    pred = jk @ p['wpred'] + p['bpred']
    return 0.5 * pred + 0.5 * mlp_out


if __name__ == "__main__":
    # Small shapes: N=16 nodes, input_size=8, hidden_size=32, num_layers=2, jk='max'.
    N, F, H, L = 16, 8, 32, 2
    alpha, lamda = 0.1, 1.0

    key = jax.random.PRNGKey(0)
    ks = jax.random.split(key, 16)

    x = jax.random.normal(ks[0], (N, F), jnp.float32)
    # Deterministic row-normalized dense adjacency (with self loops).
    a = (jax.random.uniform(ks[1], (N, N)) > 0.6).astype(jnp.float32)
    a = jnp.maximum(a, a.T) + jnp.eye(N, dtype=jnp.float32)
    adj = a / jnp.sum(a, axis=1, keepdims=True)

    def init(k, shape, scale):
        return (jax.random.normal(k, shape, jnp.float32) * scale).astype(jnp.float32)

    params = {
        'wproj': init(ks[2], (F, H), 1.0 / math.sqrt(F)),
        'bproj': init(ks[3], (1, H), 0.1),
        'wgcn':  init(ks[4], (L, H, H), 1.0 / math.sqrt(H)),
        'wpred': init(ks[5], (H, 1), 1.0 / math.sqrt(H)),
        'bpred': init(ks[6], (1, 1), 0.1),
        'w1':    init(ks[7], (F, H), 1.0 / math.sqrt(F)),
        'b1':    init(ks[8], (1, H), 0.1),
        'g1':    jnp.ones((1, H), jnp.float32),
        'be1':   jnp.zeros((1, H), jnp.float32),
        'w2':    init(ks[9], (H, H), 1.0 / math.sqrt(H)),
        'b2':    init(ks[10], (1, H), 0.1),
        'g2':    jnp.ones((1, H), jnp.float32),
        'be2':   jnp.zeros((1, H), jnp.float32),
        'w3':    init(ks[11], (H, 1), 1.0 / math.sqrt(H)),
        'b3':    init(ks[12], (1, 1), 0.1),
    }

    ref = _reference(x, adj, params, num_layers=L, alpha=alpha, lamda=lamda, ln_eps=1e-5)

    # f32 adjacency path (exact semantics).
    out = jump_gcn_v2_forward(x, adj, params, num_layers=L, alpha=alpha, lamda=lamda)
    out = jax.block_until_ready(out)
    assert out.shape == (N, 1)
    assert jnp.allclose(out, ref, rtol=1e-3, atol=1e-4), (out, ref)

    # bf16 adjacency path (MXU-native fast path for the only O(N^2) matmul).
    out_bf16 = jump_gcn_v2_forward(x, adj, params, num_layers=L, alpha=alpha,
                                   lamda=lamda, adj_dtype=jnp.bfloat16)
    out_bf16 = jax.block_until_ready(out_bf16)
    assert jnp.allclose(out_bf16, ref, rtol=5e-2, atol=5e-2), (out_bf16, ref)

    print("KERNEL_OK")
</pallas_src>

<mosaic_0001>
module attributes {stable_mosaic.version = 11 : i64} {
  func.func @_jump_gcn_v2_kernel(%arg0: memref<16x8xf32, #tpu.memory_space<vmem>>, %arg1: memref<16x16xf32, #tpu.memory_space<vmem>>, %arg2: memref<16x32xf32, #tpu.memory_space<vmem>>, %arg3: memref<8x32xf32, #tpu.memory_space<vmem>>, %arg4: memref<3x32x32xf32, #tpu.memory_space<vmem>>, %arg5: memref<64x1xf32, #tpu.memory_space<vmem>>, %arg6: memref<16x1xf32, #tpu.memory_space<vmem>>) attributes {dimension_semantics = [], scalar_prefetch = 0 : i64, scratch_operands = 0 : i64, tpu.core_type = #tpu.core_type<tc>} {
    %c0 = arith.constant 0 : index
    %c0_0 = arith.constant 0 : index
    %0 = vector.load %arg0[%c0, %c0_0] : memref<16x8xf32, #tpu.memory_space<vmem>>, vector<16x8xf32>
    %c0_1 = arith.constant 0 : index
    %c0_2 = arith.constant 0 : index
    %1 = vector.load %arg1[%c0_1, %c0_2] : memref<16x16xf32, #tpu.memory_space<vmem>>, vector<16x16xf32>
    %c0_3 = arith.constant 0 : index
    %c0_4 = arith.constant 0 : index
    %2 = vector.load %arg3[%c0_3, %c0_4] : memref<8x32xf32, #tpu.memory_space<vmem>>, vector<8x32xf32>
    %3 = vector.extract_strided_slice %2 {offsets = [0, 0], sizes = [1, 32], strides = [1, 1]} : vector<8x32xf32> to vector<1x32xf32>
    %4 = vector.extract_strided_slice %2 {offsets = [1, 0], sizes = [1, 32], strides = [1, 1]} : vector<8x32xf32> to vector<1x32xf32>
    %5 = vector.extract_strided_slice %2 {offsets = [2, 0], sizes = [1, 32], strides = [1, 1]} : vector<8x32xf32> to vector<1x32xf32>
    %6 = vector.extract_strided_slice %2 {offsets = [3, 0], sizes = [1, 32], strides = [1, 1]} : vector<8x32xf32> to vector<1x32xf32>
    %7 = vector.extract_strided_slice %2 {offsets = [4, 0], sizes = [1, 32], strides = [1, 1]} : vector<8x32xf32> to vector<1x32xf32>
    %8 = vector.extract_strided_slice %2 {offsets = [5, 0], sizes = [1, 32], strides = [1, 1]} : vector<8x32xf32> to vector<1x32xf32>
    %9 = vector.extract_strided_slice %2 {offsets = [6, 0], sizes = [1, 32], strides = [1, 1]} : vector<8x32xf32> to vector<1x32xf32>
    %10 = vector.extract_strided_slice %2 {offsets = [7, 0], sizes = [1, 1], strides = [1, 1]} : vector<8x32xf32> to vector<1x1xf32>
    %c0_5 = arith.constant 0 : index
    %c0_6 = arith.constant 0 : index
    %11 = vector.load %arg2[%c0_5, %c0_6] : memref<16x32xf32, #tpu.memory_space<vmem>>, vector<16x32xf32>
    %12 = vector.extract_strided_slice %11 {offsets = [0, 0], sizes = [8, 32], strides = [1, 1]} : vector<16x32xf32> to vector<8x32xf32>
    %cst = arith.constant dense<0.000000e+00> : vector<16x32xf32>
    %13 = tpu.matmul %0, %12, %cst {dimension_numbers = #tpu.dot_dimension_numbers<[1], [0], [0], [1], [0, 0, 1, 1], [], []>} : vector<16x8xf32>, vector<8x32xf32>, vector<16x32xf32> -> vector<16x32xf32>
    %14 = vector.broadcast %3 : vector<1x32xf32> to vector<16x32xf32>
    %15 = arith.addf %13, %14 : vector<16x32xf32>
    %16 = vector.extract_strided_slice %11 {offsets = [8, 0], sizes = [8, 32], strides = [1, 1]} : vector<16x32xf32> to vector<8x32xf32>
    %cst_7 = arith.constant dense<0.000000e+00> : vector<16x32xf32>
    %17 = tpu.matmul %0, %16, %cst_7 {dimension_numbers = #tpu.dot_dimension_numbers<[1], [0], [0], [1], [0, 0, 1, 1], [], []>} : vector<16x8xf32>, vector<8x32xf32>, vector<16x32xf32> -> vector<16x32xf32>
    %18 = vector.broadcast %4 : vector<1x32xf32> to vector<16x32xf32>
    %19 = arith.addf %17, %18 : vector<16x32xf32>
    %cst_8 = arith.constant 0.000000e+00 : f32
    %20 = vector.broadcast %cst_8 : f32 to vector<16x32xf32>
    %21 = arith.maximumf %15, %20 : vector<16x32xf32>
    %cst_9 = arith.constant dense<0.000000e+00> : vector<16xf32>
    %22 = vector.multi_reduction <add>, %21, %cst_9 [1] : vector<16x32xf32> to vector<16xf32>
    %23 = vector.shape_cast %22 : vector<16xf32> to vector<16x1xf32>
    %cst_10 = arith.constant 3.125000e-02 : f32
    %24 = vector.broadcast %cst_10 : f32 to vector<16x1xf32>
    %25 = arith.mulf %23, %24 : vector<16x1xf32>
    %26 = arith.mulf %21, %21 : vector<16x32xf32>
    %cst_11 = arith.constant dense<0.000000e+00> : vector<16xf32>
    %27 = vector.multi_reduction <add>, %26, %cst_11 [1] : vector<16x32xf32> to vector<16xf32>
    %28 = vector.shape_cast %27 : vector<16xf32> to vector<16x1xf32>
    %cst_12 = arith.constant 3.125000e-02 : f32
    %29 = vector.broadcast %cst_12 : f32 to vector<16x1xf32>
    %30 = arith.mulf %28, %29 : vector<16x1xf32>
    %31 = arith.mulf %25, %25 : vector<16x1xf32>
    %32 = arith.subf %30, %31 : vector<16x1xf32>
    %33 = vector.broadcast %25 : vector<16x1xf32> to vector<16x32xf32>
    %34 = arith.subf %21, %33 : vector<16x32xf32>
    %cst_13 = arith.constant 9.99999974E-6 : f32
    %35 = vector.broadcast %cst_13 : f32 to vector<16x1xf32>
    %36 = arith.addf %32, %35 : vector<16x1xf32>
    %37 = math.rsqrt %36 : vector<16x1xf32>
    %38 = vector.broadcast %37 : vector<16x1xf32> to vector<16x32xf32>
    %39 = arith.mulf %34, %38 : vector<16x32xf32>
    %40 = vector.broadcast %6 : vector<1x32xf32> to vector<16x32xf32>
    %41 = arith.mulf %39, %40 : vector<16x32xf32>
    %42 = vector.broadcast %7 : vector<1x32xf32> to vector<16x32xf32>
    %43 = arith.addf %41, %42 : vector<16x32xf32>
    %c0_14 = arith.constant 0 : index
    %c0_15 = arith.constant 0 : index
    %c0_16 = arith.constant 0 : index
    %44 = vector.load %arg4[%c0_14, %c0_15, %c0_16] : memref<3x32x32xf32, #tpu.memory_space<vmem>>, vector<1x32x32xf32>
    %45 = vector.shape_cast %44 : vector<1x32x32xf32> to vector<32x32xf32>
    %cst_17 = arith.constant dense<0.000000e+00> : vector<16x32xf32>
    %46 = tpu.matmul %43, %45, %cst_17 {dimension_numbers = #tpu.dot_dimension_numbers<[1], [0], [0], [1], [0, 0, 1, 1], [], []>} : vector<16x32xf32>, vector<32x32xf32>, vector<16x32xf32> -> vector<16x32xf32>
    %47 = vector.broadcast %5 : vector<1x32xf32> to vector<16x32xf32>
    %48 = arith.addf %46, %47 : vector<16x32xf32>
    %cst_18 = arith.constant 0.000000e+00 : f32
    %49 = vector.broadcast %cst_18 : f32 to vector<16x32xf32>
    %50 = arith.maximumf %48, %49 : vector<16x32xf32>
    %cst_19 = arith.constant dense<0.000000e+00> : vector<16xf32>
    %51 = vector.multi_reduction <add>, %50, %cst_19 [1] : vector<16x32xf32> to vector<16xf32>
    %52 = vector.shape_cast %51 : vector<16xf32> to vector<16x1xf32>
    %cst_20 = arith.constant 3.125000e-02 : f32
    %53 = vector.broadcast %cst_20 : f32 to vector<16x1xf32>
    %54 = arith.mulf %52, %53 : vector<16x1xf32>
    %55 = arith.mulf %50, %50 : vector<16x32xf32>
    %cst_21 = arith.constant dense<0.000000e+00> : vector<16xf32>
    %56 = vector.multi_reduction <add>, %55, %cst_21 [1] : vector<16x32xf32> to vector<16xf32>
    %57 = vector.shape_cast %56 : vector<16xf32> to vector<16x1xf32>
    %cst_22 = arith.constant 3.125000e-02 : f32
    %58 = vector.broadcast %cst_22 : f32 to vector<16x1xf32>
    %59 = arith.mulf %57, %58 : vector<16x1xf32>
    %60 = arith.mulf %54, %54 : vector<16x1xf32>
    %61 = arith.subf %59, %60 : vector<16x1xf32>
    %62 = vector.broadcast %54 : vector<16x1xf32> to vector<16x32xf32>
    %63 = arith.subf %50, %62 : vector<16x32xf32>
    %cst_23 = arith.constant 9.99999974E-6 : f32
    %64 = vector.broadcast %cst_23 : f32 to vector<16x1xf32>
    %65 = arith.addf %61, %64 : vector<16x1xf32>
    %66 = math.rsqrt %65 : vector<16x1xf32>
    %67 = vector.broadcast %66 : vector<16x1xf32> to vector<16x32xf32>
    %68 = arith.mulf %63, %67 : vector<16x32xf32>
    %69 = vector.broadcast %8 : vector<1x32xf32> to vector<16x32xf32>
    %70 = arith.mulf %68, %69 : vector<16x32xf32>
    %71 = vector.broadcast %9 : vector<1x32xf32> to vector<16x32xf32>
    %72 = arith.addf %70, %71 : vector<16x32xf32>
    %cst_24 = arith.constant 1.000000e-01 : f32
    %73 = vector.broadcast %cst_24 : f32 to vector<16x32xf32>
    %74 = arith.mulf %73, %19 : vector<16x32xf32>
    %cst_25 = arith.constant dense<0.000000e+00> : vector<16x32xf32>
    %75 = tpu.matmul %1, %19, %cst_25 {dimension_numbers = #tpu.dot_dimension_numbers<[1], [0], [0], [1], [0, 0, 1, 1], [], []>} : vector<16x16xf32>, vector<16x32xf32>, vector<16x32xf32> -> vector<16x32xf32>
    %76 = arith.addf %75, %74 : vector<16x32xf32>
    %c1 = arith.constant 1 : index
    %c0_26 = arith.constant 0 : index
    %c0_27 = arith.constant 0 : index
    %77 = vector.load %arg4[%c1, %c0_26, %c0_27] : memref<3x32x32xf32, #tpu.memory_space<vmem>>, vector<1x32x32xf32>
    %78 = vector.shape_cast %77 : vector<1x32x32xf32> to vector<32x32xf32>
    %cst_28 = arith.constant dense<0.000000e+00> : vector<16x32xf32>
    %79 = tpu.matmul %76, %78, %cst_28 {dimension_numbers = #tpu.dot_dimension_numbers<[1], [0], [0], [1], [0, 0, 1, 1], [], []>} : vector<16x32xf32>, vector<32x32xf32>, vector<16x32xf32> -> vector<16x32xf32>
    %cst_29 = arith.constant 0.000000e+00 : f32
    %80 = vector.broadcast %cst_29 : f32 to vector<16x32xf32>
    %81 = arith.maximumf %79, %80 : vector<16x32xf32>
    %cst_30 = arith.constant dense<0.000000e+00> : vector<16x32xf32>
    %82 = tpu.matmul %1, %81, %cst_30 {dimension_numbers = #tpu.dot_dimension_numbers<[1], [0], [0], [1], [0, 0, 1, 1], [], []>} : vector<16x16xf32>, vector<16x32xf32>, vector<16x32xf32> -> vector<16x32xf32>
    %83 = arith.addf %82, %74 : vector<16x32xf32>
    %c2 = arith.constant 2 : index
    %c0_31 = arith.constant 0 : index
    %c0_32 = arith.constant 0 : index
    %84 = vector.load %arg4[%c2, %c0_31, %c0_32] : memref<3x32x32xf32, #tpu.memory_space<vmem>>, vector<1x32x32xf32>
    %85 = vector.shape_cast %84 : vector<1x32x32xf32> to vector<32x32xf32>
    %cst_33 = arith.constant dense<0.000000e+00> : vector<16x32xf32>
    %86 = tpu.matmul %83, %85, %cst_33 {dimension_numbers = #tpu.dot_dimension_numbers<[1], [0], [0], [1], [0, 0, 1, 1], [], []>} : vector<16x32xf32>, vector<32x32xf32>, vector<16x32xf32> -> vector<16x32xf32>
    %cst_34 = arith.constant 0.000000e+00 : f32
    %87 = vector.broadcast %cst_34 : f32 to vector<16x32xf32>
    %88 = arith.maximumf %86, %87 : vector<16x32xf32>
    %89 = arith.maximumf %81, %88 : vector<16x32xf32>
    %c0_35 = arith.constant 0 : index
    %c0_36 = arith.constant 0 : index
    %90 = vector.load %arg5[%c0_35, %c0_36] : memref<64x1xf32, #tpu.memory_space<vmem>>, vector<64x1xf32>
    %91 = vector.extract_strided_slice %90 {offsets = [0, 0], sizes = [32, 1], strides = [1, 1]} : vector<64x1xf32> to vector<32x1xf32>
    %cst_37 = arith.constant dense<0.000000e+00> : vector<16x1xf32>
    %92 = tpu.matmul %89, %91, %cst_37 {dimension_numbers = #tpu.dot_dimension_numbers<[1], [0], [0], [1], [0, 0, 1, 1], [], []>} : vector<16x32xf32>, vector<32x1xf32>, vector<16x1xf32> -> vector<16x1xf32>
    %93 = vector.extract_strided_slice %90 {offsets = [32, 0], sizes = [32, 1], strides = [1, 1]} : vector<64x1xf32> to vector<32x1xf32>
    %cst_38 = arith.constant dense<0.000000e+00> : vector<16x1xf32>
    %94 = tpu.matmul %72, %93, %cst_38 {dimension_numbers = #tpu.dot_dimension_numbers<[1], [0], [0], [1], [0, 0, 1, 1], [], []>} : vector<16x32xf32>, vector<32x1xf32>, vector<16x1xf32> -> vector<16x1xf32>
    %95 = arith.addf %92, %94 : vector<16x1xf32>
    %96 = vector.broadcast %10 : vector<1x1xf32> to vector<16x1xf32>
    %97 = arith.addf %95, %96 : vector<16x1xf32>
    %c0_39 = arith.constant 0 : index
    %c0_40 = arith.constant 0 : index
    %98 = vector.load %arg6[%c0_39, %c0_40] : memref<16x1xf32, #tpu.memory_space<vmem>>, vector<16x1xf32>
    tpu.vector_store %arg6[%c0_39, %c0_40], %97 {strides = array<i32>} : memref<16x1xf32, #tpu.memory_space<vmem>>, vector<16x1xf32>,
    return
  }
}

</mosaic_0001>

<llo_original>
// kernel: tpu_custom_call.1
$region0: #{tpu_custom_call.1}
  #allocation0 [shape = 'u32[]', space=smem, size = 0x4, offset = 0x4, fixed_abs, tag = 'smem constant byte address 0x4 - core index']
  #allocation1 [shape = 'u32[144,128]{1,0:T(1,128)}', space=vmem, size = 0x12000, scoped, tag = 'internal scratch']
  %s0 = inlined_call_operand.vmem [shape: f32[16,8], index: 0, kind: input, shape index: {}]
  %s1 = inlined_call_operand.hbm [shape: f32[16,16], index: 1, kind: input, shape index: {}]
  %s2 = inlined_call_operand.hbm [shape: f32[16,32], index: 2, kind: input, shape index: {}]
  %s3 = inlined_call_operand.vmem [shape: f32[8,32], index: 3, kind: input, shape index: {}]
  %s4 = inlined_call_operand.vmem [shape: f32[3,32,32], index: 4, kind: input, shape index: {}]
  %s5 = inlined_call_operand.vmem [shape: f32[64,1], index: 5, kind: input, shape index: {}]
  %s6 = inlined_call_operand.vmem [shape: f32[16,1], index: 6, kind: output, shape index: {}]
  %s7 = sld [smem:[#allocation0]]
  $region42: #{tpu_custom_call.1} parent=0
    _
  %s9 = ssub.s32 1, %s7
  %s10 = scalar_select 0, %s9, %s7
  $region1: #{tpu_custom_call.1} parent=0
    #allocation2 [shape = 'u8[8192]{0}', space=vmem, size = 0x2000, scoped, tag = 'input window, operand 1, single buffered']
    #allocation3 [shape = 's32[1]{0}', space=sflag, size = 0x4, scoped, tag = 'scoped memory for tpu_custom_call.1']
    #allocation4 [shape = 'u8[8192]{0}', space=vmem, size = 0x2000, scoped, tag = 'input window, operand 2, single buffered']
    #allocation5 [shape = 's32[1]{0}', space=sflag, size = 0x4, scoped, tag = 'scoped memory for tpu_custom_call.1']
    %11 = vsyncpa [#allocation3], 0
    %12 = vsyncpa [#allocation5], 0
    // Predicated region
    $region2: #{tpu_custom_call.1} parent=1 // pred_check
      _
    $region3: #{tpu_custom_call.1} parent=1 // pred_check_branch
      %14 = sbr.rel (0) target = $region5
    $region4: #{tpu_custom_call.1} parent=1 // pred_region
      _
    $region5: #{tpu_custom_call.1} parent=1 // pred_fallthru
      _
    // Predicated region
    $region6: #{tpu_custom_call.1} parent=1 // pred_check
      _
    $region7: #{tpu_custom_call.1} parent=1 // pred_check_branch
      %16 = sbr.rel (0) target = $region9
    $region8: #{tpu_custom_call.1} parent=1 // pred_region
      %s18 = ssub.s32 256, 256
      %19 = vsyncadd [#allocation3], %s18
      %s20 = sshll.u32 [#allocation2], 4
      %s21 = int_to_ptr.vmem [resolvable:$true] %s20
      %26 = dma.hbm_to_vmem [thread:$0]  %s1, 256, %s21, [#allocation3], 128, 128, 8
    $region9: #{tpu_custom_call.1} parent=1 // pred_fallthru
      _
    // Predicated region
    $region10: #{tpu_custom_call.1} parent=1 // pred_check
      _
    $region11: #{tpu_custom_call.1} parent=1 // pred_check_branch
      %28 = sbr.rel (0) target = $region13
    $region12: #{tpu_custom_call.1} parent=1 // pred_region
      %s30 = ssub.s32 256, 256
      %31 = vsyncadd [#allocation5], %s30
      %s32 = sshll.u32 [#allocation4], 4
      %s33 = int_to_ptr.vmem [resolvable:$true] %s32
      %38 = dma.hbm_to_vmem [thread:$0]  %s2, 256, %s33, [#allocation5], 128, 128, 8
    $region13: #{tpu_custom_call.1} parent=1 // pred_fallthru
      _
    // Predicated region
    $region14: #{tpu_custom_call.1} parent=1 // pred_check
      _
    $region15: #{tpu_custom_call.1} parent=1 // pred_check_branch
      %40 = sbr.rel (0) target = $region17
    $region16: #{tpu_custom_call.1} parent=1 // pred_region
      _
    $region17: #{tpu_custom_call.1} parent=1 // pred_fallthru
      _
    // Predicated region
    $region18: #{tpu_custom_call.1} parent=1 // pred_check
      _
    $region19: #{tpu_custom_call.1} parent=1 // pred_check_branch
      %42 = sbr.rel (0) target = $region21
    $region20: #{tpu_custom_call.1} parent=1 // pred_region
      _
    $region21: #{tpu_custom_call.1} parent=1 // pred_fallthru
      _
    // Predicated region
    $region22: #{tpu_custom_call.1} parent=1 // pred_check
      _
    $region23: #{tpu_custom_call.1} parent=1 // pred_check_branch
      %44 = sbr.rel (0) target = $region25
    $region24: #{tpu_custom_call.1} parent=1 // pred_region
      _
    $region25: #{tpu_custom_call.1} parent=1 // pred_fallthru
      _
    // Predicated region
    $region26: #{tpu_custom_call.1} parent=1 // pred_check
      _
    $region27: #{tpu_custom_call.1} parent=1 // pred_check_branch
      %46 = sbr.rel (0) target = $region29
    $region28: #{tpu_custom_call.1} parent=1 // pred_region
      %47 = dma.done [#allocation3], 256
    $region29: #{tpu_custom_call.1} parent=1 // pred_fallthru
      _
    // Predicated region
    $region30: #{tpu_custom_call.1} parent=1 // pred_check
      _
    $region31: #{tpu_custom_call.1} parent=1 // pred_check_branch
      %49 = sbr.rel (0) target = $region33
    $region32: #{tpu_custom_call.1} parent=1 // pred_region
      %50 = dma.done [#allocation5], 256
    $region33: #{tpu_custom_call.1} parent=1 // pred_fallthru
      _
    %v51 = vld [vmem:[%s0] sm:$0xff]
    %v52 = vld [vmem:[%s0 + $0x8] sm:$0xff]
    %v53 = vld [vmem:[#allocation2] sm:$0xff]
    %v54 = vld [vmem:[#allocation2 + $0x8] sm:$0xff]
    %v55 = vld [vmem:[%s3] sm:$0xff]
    %v56 = vld [vmem:[#allocation4] sm:$0xff]
    %v57 = vld [vmem:[#allocation4 + $0x8] sm:$0xff]
    %v58 = vlaneseq
    %v59 = vshrl.u32 %v58, 7
    %v60 = vsub.s32 0, %v59
    %v61 = vrot.slane %v55, %v60
    %vm62 = vcmask 64512
    %v64 = vsel %vm62, %v51, 0
    %v67 = vsel %vm62, %v52, 0
    %69 = vmatprep.subr.mxu0 0.0
    %70 = vmatpush1.msra.mxu0 %v56
    %71 = vmatprep.subr.mxu0 0.0
    %72 = vmatpush1.msra.mxu0 0.0
    %73 = vmatprep.subr.mxu0 0.0
    %74 = vmatpush1.msra.mxu0 0.0
    %75 = vmatprep.subr.mxu0 0.0
    %76 = vmatpush1.msra.mxu0 0.0
    %77 = vmatprep.subr.mxu0 0.0
    %78 = vmatpush1.msra.mxu0 0.0
    %79 = vmatprep.subr.mxu0 0.0
    %80 = vmatpush1.msra.mxu0 0.0
    %81 = vmatprep.subr.mxu0 0.0
    %82 = vmatpush1.msra.mxu0 0.0
    %83 = vmatprep.subr.mxu0 0.0
    %84 = vmatpush1.msra.mxu0 0.0
    %85 = vmatprep.subr.mxu0 0.0
    %86 = vmatpush1.msra.mxu0 0.0
    %87 = vmatprep.subr.mxu0 0.0
    %88 = vmatpush1.msra.mxu0 0.0
    %89 = vmatprep.subr.mxu0 0.0
    %90 = vmatpush1.msra.mxu0 0.0
    %91 = vmatprep.subr.mxu0 0.0
    %92 = vmatpush1.msra.mxu0 0.0
    %93 = vmatprep.subr.mxu0 0.0
    %94 = vmatpush1.msra.mxu0 0.0
    %95 = vmatprep.subr.mxu0 0.0
    %96 = vmatpush1.msra.mxu0 0.0
    %97 = vmatprep.subr.mxu0 0.0
    %98 = vmatpush1.msra.mxu0 0.0
    %99 = vmatprep.subr.mxu0 0.0
    %100 = vmatpush1.msra.mxu0 0.0
    %101 = vmatprep.subr.mxu0 0.0
    %102 = vmatpush1.msra.mxu0 0.0
    %103 = vmatprep.subr.mxu0 0.0
    %104 = vmatpush1.msra.mxu0 0.0
    %105 = vmatprep.subr.mxu0 0.0
    %106 = vmatpush1.msra.mxu0 0.0
    %107 = vmatprep.subr.mxu0 0.0
    %108 = vmatpush1.msra.mxu0 0.0
    %109 = vmatprep.subr.mxu0 0.0
    %110 = vmatpush1.msra.mxu0 0.0
    %111 = vmatprep.subr.mxu0 0.0
    %112 = vmatpush1.msra.mxu0 0.0
    %113 = vmatprep.subr.mxu0 0.0
    %114 = vmatpush1.msra.mxu0 0.0
    %115 = vmatprep.subr.mxu0 0.0
    %116 = vmatpush1.msra.mxu0 0.0
    %117 = vmatprep.subr.mxu0 0.0
    %118 = vmatpush1.msra.mxu0 0.0
    %119 = vmatprep.subr.mxu0 0.0
    %120 = vmatpush1.msra.mxu0 0.0
    %121 = vmatprep.subr.mxu0 0.0
    %122 = vmatpush1.msra.mxu0 0.0
    %123 = vmatprep.subr.mxu0 0.0
    %124 = vmatpush1.msra.mxu0 0.0
    %125 = vmatprep.subr.mxu0 0.0
    %126 = vmatpush1.msra.mxu0 0.0
    %127 = vmatprep.subr.mxu0 0.0
    %128 = vmatpush1.msra.mxu0 0.0
    %129 = vmatprep.subr.mxu0 0.0
    %130 = vmatpush1.msra.mxu0 0.0
    %131 = vmatprep.subr.mxu0 0.0
    %132 = vmatpush1.msra.mxu0 0.0
    %133 = vmatprep.mubr.f32.mxu0 0.0
    %134 = vmatmul.mubr.f32.gmra.mrb[0].mxu0 %v64
    %v135 = vpop.f32.mrb[0].mxu0
    %v136 = vadd.f32 %v61, %v135
    %v137 = vpop.f32.mrb[0].mxu0
    %138 = vmatprep.mubr.f32.mxu0 0.0
    %139 = vmatmul.mubr.f32.gmra.mrb[0].mxu0 %v67
    %v140 = vpop.f32.mrb[0].mxu0
    %v141 = vadd.f32 %v61, %v140
    %v142 = vpop.f32.mrb[0].mxu0
    %143 = vdwg.mxu0
    %v144 = vlaneseq
    %v145 = vshrl.u32 %v144, 7
    %v146 = vsub.s32 1, %v145
    %v147 = vrot.slane %v55, %v146
    %148 = vmatprep.subr.mxu0 0.0
    %149 = vmatpush1.msra.mxu0 %v57
    %150 = vmatprep.subr.mxu0 0.0
    %151 = vmatpush1.msra.mxu0 0.0
    %152 = vmatprep.subr.mxu0 0.0
    %153 = vmatpush1.msra.mxu0 0.0
    %154 = vmatprep.subr.mxu0 0.0
    %155 = vmatpush1.msra.mxu0 0.0
    %156 = vmatprep.subr.mxu0 0.0
    %157 = vmatpush1.msra.mxu0 0.0
    %158 = vmatprep.subr.mxu0 0.0
    %159 = vmatpush1.msra.mxu0 0.0
    %160 = vmatprep.subr.mxu0 0.0
    %161 = vmatpush1.msra.mxu0 0.0
    %162 = vmatprep.subr.mxu0 0.0
    %163 = vmatpush1.msra.mxu0 0.0
    %164 = vmatprep.subr.mxu0 0.0
    %165 = vmatpush1.msra.mxu0 0.0
    %166 = vmatprep.subr.mxu0 0.0
    %167 = vmatpush1.msra.mxu0 0.0
    %168 = vmatprep.subr.mxu0 0.0
    %169 = vmatpush1.msra.mxu0 0.0
    %170 = vmatprep.subr.mxu0 0.0
    %171 = vmatpush1.msra.mxu0 0.0
    %172 = vmatprep.subr.mxu0 0.0
    %173 = vmatpush1.msra.mxu0 0.0
    %174 = vmatprep.subr.mxu0 0.0
    %175 = vmatpush1.msra.mxu0 0.0
    %176 = vmatprep.subr.mxu0 0.0
    %177 = vmatpush1.msra.mxu0 0.0
    %178 = vmatprep.subr.mxu0 0.0
    %179 = vmatpush1.msra.mxu0 0.0
    %180 = vmatprep.subr.mxu0 0.0
    %181 = vmatpush1.msra.mxu0 0.0
    %182 = vmatprep.subr.mxu0 0.0
    %183 = vmatpush1.msra.mxu0 0.0
    %184 = vmatprep.subr.mxu0 0.0
    %185 = vmatpush1.msra.mxu0 0.0
    %186 = vmatprep.subr.mxu0 0.0
    %187 = vmatpush1.msra.mxu0 0.0
    %188 = vmatprep.subr.mxu0 0.0
    %189 = vmatpush1.msra.mxu0 0.0
    %190 = vmatprep.subr.mxu0 0.0
    %191 = vmatpush1.msra.mxu0 0.0
    %192 = vmatprep.subr.mxu0 0.0
    %193 = vmatpush1.msra.mxu0 0.0
    %194 = vmatprep.subr.mxu0 0.0
    %195 = vmatpush1.msra.mxu0 0.0
    %196 = vmatprep.subr.mxu0 0.0
    %197 = vmatpush1.msra.mxu0 0.0
    %198 = vmatprep.subr.mxu0 0.0
    %199 = vmatpush1.msra.mxu0 0.0
    %200 = vmatprep.subr.mxu0 0.0
    %201 = vmatpush1.msra.mxu0 0.0
    %202 = vmatprep.subr.mxu0 0.0
    %203 = vmatpush1.msra.mxu0 0.0
    %204 = vmatprep.subr.mxu0 0.0
    %205 = vmatpush1.msra.mxu0 0.0
    %206 = vmatprep.subr.mxu0 0.0
    %207 = vmatpush1.msra.mxu0 0.0
    %208 = vmatprep.subr.mxu0 0.0
    %209 = vmatpush1.msra.mxu0 0.0
    %210 = vmatprep.subr.mxu0 0.0
    %211 = vmatpush1.msra.mxu0 0.0
    %212 = vmatprep.mubr.f32.mxu0 0.0
    %213 = vmatmul.mubr.f32.gmra.mrb[0].mxu0 %v64
    %v214 = vpop.f32.mrb[0].mxu0
    %v215 = vadd.f32 %v147, %v214
    %v216 = vpop.f32.mrb[0].mxu0
    %217 = vmatprep.mubr.f32.mxu0 0.0
    %218 = vmatmul.mubr.f32.gmra.mrb[0].mxu0 %v67
    %v219 = vpop.f32.mrb[0].mxu0
    %v220 = vadd.f32 %v147, %v219
    %v221 = vpop.f32.mrb[0].mxu0
    %222 = vdwg.mxu0
    %v223 = vmax.f32 %v136, 0.0
    %v224 = vmax.f32 %v141, 0.0
    %vm225 = vcmask 261120
    %v226 = vsel %vm225, %v223, 0.0
    %227 = vadd.xlane.f32.xlu0 %v226
    %v228 = vpop.xlane.xlu0 %227
    %v229 = vsel %vm225, %v224, 0.0
    %230 = vadd.xlane.f32.xlu0 %v229
    %v231 = vpop.xlane.xlu0 %230
    %v232 = vmul.f32 %v228, 0.03125
    %v233 = vmul.f32 %v231, 0.03125
    %v234 = vmul.f32 %v223, %v223
    %v235 = vmul.f32 %v224, %v224
    %v236 = vsel %vm225, %v234, 0.0
    %237 = vadd.xlane.f32.xlu0 %v236
    %v238 = vpop.xlane.xlu0 %237
    %v239 = vsel %vm225, %v235, 0.0
    %240 = vadd.xlane.f32.xlu0 %v239
    %v241 = vpop.xlane.xlu0 %240
    %v242 = vmul.f32 %v238, 0.03125
    %v243 = vmul.f32 %v241, 0.03125
    %v244 = vmul.f32 %v232, %v232
    %v245 = vmul.f32 %v233, %v233
    %v246 = vsub.f32 %v242, %v244
    %v247 = vsub.f32 %v243, %v245
    %v248 = vsub.f32 %v223, %v232
    %v249 = vsub.f32 %v224, %v233
    %v250 = vadd.f32 %v246, 1e-05
    %v251 = vadd.f32 %v247, 1e-05
    %v252 = vrsqrt.pop %v250
    %v253 = vrsqrt.pop %v251
    %v254 = vmul.f32 %v248, %v252
    %v255 = vmul.f32 %v249, %v253
    %v256 = vlaneseq
    %v257 = vshrl.u32 %v256, 7
    %v258 = vsub.s32 3, %v257
    %v259 = vrot.slane %v55, %v258
    %v260 = vmul.f32 %v254, %v259
    %v261 = vmul.f32 %v255, %v259
    %v262 = vlaneseq
    %v263 = vshrl.u32 %v262, 7
    %v264 = vsub.s32 4, %v263
    %v265 = vrot.slane %v55, %v264
    %v266 = vadd.f32 %v260, %v265
    %v267 = vadd.f32 %v261, %v265
    %v268 = vld [vmem:[%s4] sm:$0xff]
    %v269 = vld [vmem:[%s4 + $0x8] sm:$0xff]
    %v270 = vld [vmem:[%s4 + $0x10] sm:$0xff]
    %v271 = vld [vmem:[%s4 + $0x18] sm:$0xff]
    %v272 = vlaneseq
    %v273 = vshrl.u32 %v272, 7
    %v274 = vsub.s32 2, %v273
    %v275 = vrot.slane %v55, %v274
    %v277 = vsel %vm225, %v266, 0
    %v280 = vsel %vm225, %v267, 0
    %282 = vmatprep.subr.mxu0 0.0
    %283 = vmatpush1.msra.mxu0 %v268
    %284 = vmatprep.subr.mxu0 0.0
    %285 = vmatpush1.msra.mxu0 %v269
    %286 = vmatprep.subr.mxu0 0.0
    %287 = vmatpush1.msra.mxu0 %v270
    %288 = vmatprep.subr.mxu0 0.0
    %289 = vmatpush1.msra.mxu0 %v271
    %290 = vmatprep.subr.mxu0 0.0
    %291 = vmatpush1.msra.mxu0 0.0
    %292 = vmatprep.subr.mxu0 0.0
    %293 = vmatpush1.msra.mxu0 0.0
    %294 = vmatprep.subr.mxu0 0.0
    %295 = vmatpush1.msra.mxu0 0.0
    %296 = vmatprep.subr.mxu0 0.0
    %297 = vmatpush1.msra.mxu0 0.0
    %298 = vmatprep.subr.mxu0 0.0
    %299 = vmatpush1.msra.mxu0 0.0
    %300 = vmatprep.subr.mxu0 0.0
    %301 = vmatpush1.msra.mxu0 0.0
    %302 = vmatprep.subr.mxu0 0.0
    %303 = vmatpush1.msra.mxu0 0.0
    %304 = vmatprep.subr.mxu0 0.0
    %305 = vmatpush1.msra.mxu0 0.0
    %306 = vmatprep.subr.mxu0 0.0
    %307 = vmatpush1.msra.mxu0 0.0
    %308 = vmatprep.subr.mxu0 0.0
    %309 = vmatpush1.msra.mxu0 0.0
    %310 = vmatprep.subr.mxu0 0.0
    %311 = vmatpush1.msra.mxu0 0.0
    %312 = vmatprep.subr.mxu0 0.0
    %313 = vmatpush1.msra.mxu0 0.0
    %314 = vmatprep.subr.mxu0 0.0
    %315 = vmatpush1.msra.mxu0 0.0
    %316 = vmatprep.subr.mxu0 0.0
    %317 = vmatpush1.msra.mxu0 0.0
    %318 = vmatprep.subr.mxu0 0.0
    %319 = vmatpush1.msra.mxu0 0.0
    %320 = vmatprep.subr.mxu0 0.0
    %321 = vmatpush1.msra.mxu0 0.0
    %322 = vmatprep.subr.mxu0 0.0
    %323 = vmatpush1.msra.mxu0 0.0
    %324 = vmatprep.subr.mxu0 0.0
    %325 = vmatpush1.msra.mxu0 0.0
    %326 = vmatprep.subr.mxu0 0.0
    %327 = vmatpush1.msra.mxu0 0.0
    %328 = vmatprep.subr.mxu0 0.0
    %329 = vmatpush1.msra.mxu0 0.0
    %330 = vmatprep.subr.mxu0 0.0
    %331 = vmatpush1.msra.mxu0 0.0
    %332 = vmatprep.subr.mxu0 0.0
    %333 = vmatpush1.msra.mxu0 0.0
    %334 = vmatprep.subr.mxu0 0.0
    %335 = vmatpush1.msra.mxu0 0.0
    %336 = vmatprep.subr.mxu0 0.0
    %337 = vmatpush1.msra.mxu0 0.0
    %338 = vmatprep.subr.mxu0 0.0
    %339 = vmatpush1.msra.mxu0 0.0
    %340 = vmatprep.subr.mxu0 0.0
    %341 = vmatpush1.msra.mxu0 0.0
    %342 = vmatprep.subr.mxu0 0.0
    %343 = vmatpush1.msra.mxu0 0.0
    %344 = vmatprep.subr.mxu0 0.0
    %345 = vmatpush1.msra.mxu0 0.0
    %346 = vmatprep.mubr.f32.mxu0 0.0
    %347 = vmatmul.mubr.f32.gmra.mrb[0].mxu0 %v277
    %v348 = vpop.f32.mrb[0].mxu0
    %v349 = vadd.f32 %v275, %v348
    %v350 = vpop.f32.mrb[0].mxu0
    %351 = vmatprep.mubr.f32.mxu0 0.0
    %352 = vmatmul.mubr.f32.gmra.mrb[0].mxu0 %v280
    %v353 = vpop.f32.mrb[0].mxu0
    %v354 = vadd.f32 %v275, %v353
    %v355 = vpop.f32.mrb[0].mxu0
    %356 = vdwg.mxu0
    %v357 = vmax.f32 %v349, 0.0
    %v358 = vmax.f32 %v354, 0.0
    %v359 = vsel %vm225, %v357, 0.0
    %360 = vadd.xlane.f32.xlu0 %v359
    %v361 = vpop.xlane.xlu0 %360
    %v362 = vsel %vm225, %v358, 0.0
    %363 = vadd.xlane.f32.xlu0 %v362
    %v364 = vpop.xlane.xlu0 %363
    %v365 = vmul.f32 %v361, 0.03125
    %v366 = vmul.f32 %v364, 0.03125
    %v367 = vmul.f32 %v357, %v357
    %v368 = vmul.f32 %v358, %v358
    %v369 = vsel %vm225, %v367, 0.0
    %370 = vadd.xlane.f32.xlu0 %v369
    %v371 = vpop.xlane.xlu0 %370
    %v372 = vsel %vm225, %v368, 0.0
    %373 = vadd.xlane.f32.xlu0 %v372
    %v374 = vpop.xlane.xlu0 %373
    %v375 = vmul.f32 %v371, 0.03125
    %v376 = vmul.f32 %v374, 0.03125
    %v377 = vmul.f32 %v365, %v365
    %v378 = vmul.f32 %v366, %v366
    %v379 = vsub.f32 %v375, %v377
    %v380 = vsub.f32 %v376, %v378
    %v381 = vsub.f32 %v357, %v365
    %v382 = vsub.f32 %v358, %v366
    %v383 = vadd.f32 %v379, 1e-05
    %v384 = vadd.f32 %v380, 1e-05
    %v385 = vrsqrt.pop %v383
    %v386 = vrsqrt.pop %v384
    %v387 = vmul.f32 %v381, %v385
    %v388 = vmul.f32 %v382, %v386
    %v389 = vlaneseq
    %v390 = vshrl.u32 %v389, 7
    %v391 = vsub.s32 5, %v390
    %v392 = vrot.slane %v55, %v391
    %v393 = vmul.f32 %v387, %v392
    %v394 = vmul.f32 %v388, %v392
    %v395 = vlaneseq
    %v396 = vshrl.u32 %v395, 7
    %v397 = vsub.s32 6, %v396
    %v398 = vrot.slane %v55, %v397
    %v399 = vadd.f32 %v393, %v398
    %v400 = vadd.f32 %v394, %v398
    %v401 = vmul.f32 %v215, 0.1
    %v402 = vmul.f32 %v220, 0.1
    %vm403 = vcmask 130048
    %v405 = vsel %vm403, %v53, 0
    %v408 = vsel %vm403, %v54, 0
    %410 = vmatprep.subr.mxu0 0.0
    %411 = vmatpush1.msra.mxu0 %v215
    %412 = vmatprep.subr.mxu0 0.0
    %413 = vmatpush1.msra.mxu0 %v220
    %414 = vmatprep.subr.mxu0 0.0
    %415 = vmatpush1.msra.mxu0 0.0
    %416 = vmatprep.subr.mxu0 0.0
    %417 = vmatpush1.msra.mxu0 0.0
    %418 = vmatprep.subr.mxu0 0.0
    %419 = vmatpush1.msra.mxu0 0.0
    %420 = vmatprep.subr.mxu0 0.0
    %421 = vmatpush1.msra.mxu0 0.0
    %422 = vmatprep.subr.mxu0 0.0
    %423 = vmatpush1.msra.mxu0 0.0
    %424 = vmatprep.subr.mxu0 0.0
    %425 = vmatpush1.msra.mxu0 0.0
    %426 = vmatprep.subr.mxu0 0.0
    %427 = vmatpush1.msra.mxu0 0.0
    %428 = vmatprep.subr.mxu0 0.0
    %429 = vmatpush1.msra.mxu0 0.0
    %430 = vmatprep.subr.mxu0 0.0
    %431 = vmatpush1.msra.mxu0 0.0
    %432 = vmatprep.subr.mxu0 0.0
    %433 = vmatpush1.msra.mxu0 0.0
    %434 = vmatprep.subr.mxu0 0.0
    %435 = vmatpush1.msra.mxu0 0.0
    %436 = vmatprep.subr.mxu0 0.0
    %437 = vmatpush1.msra.mxu0 0.0
    %438 = vmatprep.subr.mxu0 0.0
    %439 = vmatpush1.msra.mxu0 0.0
    %440 = vmatprep.subr.mxu0 0.0
    %441 = vmatpush1.msra.mxu0 0.0
    %442 = vmatprep.subr.mxu0 0.0
    %443 = vmatpush1.msra.mxu0 0.0
    %444 = vmatprep.subr.mxu0 0.0
    %445 = vmatpush1.msra.mxu0 0.0
    %446 = vmatprep.subr.mxu0 0.0
    %447 = vmatpush1.msra.mxu0 0.0
    %448 = vmatprep.subr.mxu0 0.0
    %449 = vmatpush1.msra.mxu0 0.0
    %450 = vmatprep.subr.mxu0 0.0
    %451 = vmatpush1.msra.mxu0 0.0
    %452 = vmatprep.subr.mxu0 0.0
    %453 = vmatpush1.msra.mxu0 0.0
    %454 = vmatprep.subr.mxu0 0.0
    %455 = vmatpush1.msra.mxu0 0.0
    %456 = vmatprep.subr.mxu0 0.0
    %457 = vmatpush1.msra.mxu0 0.0
    %458 = vmatprep.subr.mxu0 0.0
    %459 = vmatpush1.msra.mxu0 0.0
    %460 = vmatprep.subr.mxu0 0.0
    %461 = vmatpush1.msra.mxu0 0.0
    %462 = vmatprep.subr.mxu0 0.0
    %463 = vmatpush1.msra.mxu0 0.0
    %464 = vmatprep.subr.mxu0 0.0
    %465 = vmatpush1.msra.mxu0 0.0
    %466 = vmatprep.subr.mxu0 0.0
    %467 = vmatpush1.msra.mxu0 0.0
    %468 = vmatprep.subr.mxu0 0.0
    %469 = vmatpush1.msra.mxu0 0.0
    %470 = vmatprep.subr.mxu0 0.0
    %471 = vmatpush1.msra.mxu0 0.0
    %472 = vmatprep.subr.mxu0 0.0
    %473 = vmatpush1.msra.mxu0 0.0
    %474 = vmatprep.mubr.f32.mxu0 0.0
    %475 = vmatmul.mubr.f32.gmra.mrb[0].mxu0 %v405
    %v476 = vpop.f32.mrb[0].mxu0
    %v477 = vadd.f32 %v401, %v476
    %v478 = vpop.f32.mrb[0].mxu0
    %479 = vmatprep.mubr.f32.mxu0 0.0
    %480 = vmatmul.mubr.f32.gmra.mrb[0].mxu0 %v408
    %v481 = vpop.f32.mrb[0].mxu0
    %v482 = vadd.f32 %v402, %v481
    %v483 = vpop.f32.mrb[0].mxu0
    %484 = vdwg.mxu0
    %s485 = scalar_lea.vmem %s4, 32
    %v486 = vld [vmem:[%s485] sm:$0xff]
    %v487 = vld [vmem:[%s485 + $0x8] sm:$0xff]
    %v488 = vld [vmem:[%s485 + $0x10] sm:$0xff]
    %v489 = vld [vmem:[%s485 + $0x18] sm:$0xff]
    %v491 = vsel %vm225, %v477, 0
    %v494 = vsel %vm225, %v482, 0
    %496 = vmatprep.subr.mxu0 0.0
    %497 = vmatpush1.msra.mxu0 %v486
    %498 = vmatprep.subr.mxu0 0.0
    %499 = vmatpush1.msra.mxu0 %v487
    %500 = vmatprep.subr.mxu0 0.0
    %501 = vmatpush1.msra.mxu0 %v488
    %502 = vmatprep.subr.mxu0 0.0
    %503 = vmatpush1.msra.mxu0 %v489
    %504 = vmatprep.subr.mxu0 0.0
    %505 = vmatpush1.msra.mxu0 0.0
    %506 = vmatprep.subr.mxu0 0.0
    %507 = vmatpush1.msra.mxu0 0.0
    %508 = vmatprep.subr.mxu0 0.0
    %509 = vmatpush1.msra.mxu0 0.0
    %510 = vmatprep.subr.mxu0 0.0
    %511 = vmatpush1.msra.mxu0 0.0
    %512 = vmatprep.subr.mxu0 0.0
    %513 = vmatpush1.msra.mxu0 0.0
    %514 = vmatprep.subr.mxu0 0.0
    %515 = vmatpush1.msra.mxu0 0.0
    %516 = vmatprep.subr.mxu0 0.0
    %517 = vmatpush1.msra.mxu0 0.0
    %518 = vmatprep.subr.mxu0 0.0
    %519 = vmatpush1.msra.mxu0 0.0
    %520 = vmatprep.subr.mxu0 0.0
    %521 = vmatpush1.msra.mxu0 0.0
    %522 = vmatprep.subr.mxu0 0.0
    %523 = vmatpush1.msra.mxu0 0.0
    %524 = vmatprep.subr.mxu0 0.0
    %525 = vmatpush1.msra.mxu0 0.0
    %526 = vmatprep.subr.mxu0 0.0
    %527 = vmatpush1.msra.mxu0 0.0
    %528 = vmatprep.subr.mxu0 0.0
    %529 = vmatpush1.msra.mxu0 0.0
    %530 = vmatprep.subr.mxu0 0.0
    %531 = vmatpush1.msra.mxu0 0.0
    %532 = vmatprep.subr.mxu0 0.0
    %533 = vmatpush1.msra.mxu0 0.0
    %534 = vmatprep.subr.mxu0 0.0
    %535 = vmatpush1.msra.mxu0 0.0
    %536 = vmatprep.subr.mxu0 0.0
    %537 = vmatpush1.msra.mxu0 0.0
    %538 = vmatprep.subr.mxu0 0.0
    %539 = vmatpush1.msra.mxu0 0.0
    %540 = vmatprep.subr.mxu0 0.0
    %541 = vmatpush1.msra.mxu0 0.0
    %542 = vmatprep.subr.mxu0 0.0
    %543 = vmatpush1.msra.mxu0 0.0
    %544 = vmatprep.subr.mxu0 0.0
    %545 = vmatpush1.msra.mxu0 0.0
    %546 = vmatprep.subr.mxu0 0.0
    %547 = vmatpush1.msra.mxu0 0.0
    %548 = vmatprep.subr.mxu0 0.0
    %549 = vmatpush1.msra.mxu0 0.0
    %550 = vmatprep.subr.mxu0 0.0
    %551 = vmatpush1.msra.mxu0 0.0
    %552 = vmatprep.subr.mxu0 0.0
    %553 = vmatpush1.msra.mxu0 0.0
    %554 = vmatprep.subr.mxu0 0.0
    %555 = vmatpush1.msra.mxu0 0.0
    %556 = vmatprep.subr.mxu0 0.0
    %557 = vmatpush1.msra.mxu0 0.0
    %558 = vmatprep.subr.mxu0 0.0
    %559 = vmatpush1.msra.mxu0 0.0
    %560 = vmatprep.mubr.f32.mxu0 0.0
    %561 = vmatmul.mubr.f32.gmra.mrb[0].mxu0 %v491
    %v562 = vpop.f32.mrb[0].mxu0
    %v563 = vadd.f32 0.0, %v562
    %v564 = vpop.f32.mrb[0].mxu0
    %565 = vmatprep.mubr.f32.mxu0 0.0
    %566 = vmatmul.mubr.f32.gmra.mrb[0].mxu0 %v494
    %v567 = vpop.f32.mrb[0].mxu0
    %v568 = vadd.f32 0.0, %v567
    %v569 = vpop.f32.mrb[0].mxu0
    %570 = vdwg.mxu0
    %v571 = vmax.f32 %v563, 0.0
    %v572 = vmax.f32 %v568, 0.0
    %573 = vmatprep.subr.mxu0 0.0
    %574 = vmatpush1.msra.mxu0 %v571
    %575 = vmatprep.subr.mxu0 0.0
    %576 = vmatpush1.msra.mxu0 %v572
    %577 = vmatprep.subr.mxu0 0.0
    %578 = vmatpush1.msra.mxu0 0.0
    %579 = vmatprep.subr.mxu0 0.0
    %580 = vmatpush1.msra.mxu0 0.0
    %581 = vmatprep.subr.mxu0 0.0
    %582 = vmatpush1.msra.mxu0 0.0
    %583 = vmatprep.subr.mxu0 0.0
    %584 = vmatpush1.msra.mxu0 0.0
    %585 = vmatprep.subr.mxu0 0.0
    %586 = vmatpush1.msra.mxu0 0.0
    %587 = vmatprep.subr.mxu0 0.0
    %588 = vmatpush1.msra.mxu0 0.0
    %589 = vmatprep.subr.mxu0 0.0
    %590 = vmatpush1.msra.mxu0 0.0
    %591 = vmatprep.subr.mxu0 0.0
    %592 = vmatpush1.msra.mxu0 0.0
    %593 = vmatprep.subr.mxu0 0.0
    %594 = vmatpush1.msra.mxu0 0.0
    %595 = vmatprep.subr.mxu0 0.0
    %596 = vmatpush1.msra.mxu0 0.0
    %597 = vmatprep.subr.mxu0 0.0
    %598 = vmatpush1.msra.mxu0 0.0
    %599 = vmatprep.subr.mxu0 0.0
    %600 = vmatpush1.msra.mxu0 0.0
    %601 = vmatprep.subr.mxu0 0.0
    %602 = vmatpush1.msra.mxu0 0.0
    %603 = vmatprep.subr.mxu0 0.0
    %604 = vmatpush1.msra.mxu0 0.0
    %605 = vmatprep.subr.mxu0 0.0
    %606 = vmatpush1.msra.mxu0 0.0
    %607 = vmatprep.subr.mxu0 0.0
    %608 = vmatpush1.msra.mxu0 0.0
    %609 = vmatprep.subr.mxu0 0.0
    %610 = vmatpush1.msra.mxu0 0.0
    %611 = vmatprep.subr.mxu0 0.0
    %612 = vmatpush1.msra.mxu0 0.0
    %613 = vmatprep.subr.mxu0 0.0
    %614 = vmatpush1.msra.mxu0 0.0
    %615 = vmatprep.subr.mxu0 0.0
    %616 = vmatpush1.msra.mxu0 0.0
    %617 = vmatprep.subr.mxu0 0.0
    %618 = vmatpush1.msra.mxu0 0.0
    %619 = vmatprep.subr.mxu0 0.0
    %620 = vmatpush1.msra.mxu0 0.0
    %621 = vmatprep.subr.mxu0 0.0
    %622 = vmatpush1.msra.mxu0 0.0
    %623 = vmatprep.subr.mxu0 0.0
    %624 = vmatpush1.msra.mxu0 0.0
    %625 = vmatprep.subr.mxu0 0.0
    %626 = vmatpush1.msra.mxu0 0.0
    %627 = vmatprep.subr.mxu0 0.0
    %628 = vmatpush1.msra.mxu0 0.0
    %629 = vmatprep.subr.mxu0 0.0
    %630 = vmatpush1.msra.mxu0 0.0
    %631 = vmatprep.subr.mxu0 0.0
    %632 = vmatpush1.msra.mxu0 0.0
    %633 = vmatprep.subr.mxu0 0.0
    %634 = vmatpush1.msra.mxu0 0.0
    %635 = vmatprep.subr.mxu0 0.0
    %636 = vmatpush1.msra.mxu0 0.0
    %637 = vmatprep.mubr.f32.mxu0 0.0
    %638 = vmatmul.mubr.f32.gmra.mrb[0].mxu0 %v405
    %v639 = vpop.f32.mrb[0].mxu0
    %v640 = vadd.f32 %v401, %v639
    %v641 = vpop.f32.mrb[0].mxu0
    %642 = vmatprep.mubr.f32.mxu0 0.0
    %643 = vmatmul.mubr.f32.gmra.mrb[0].mxu0 %v408
    %v644 = vpop.f32.mrb[0].mxu0
    %v645 = vadd.f32 %v402, %v644
    %v646 = vpop.f32.mrb[0].mxu0
    %647 = vdwg.mxu0
    %s648 = scalar_lea.vmem %s4, 64
    %v649 = vld [vmem:[%s648] sm:$0xff]
    %v650 = vld [vmem:[%s648 + $0x8] sm:$0xff]
    %v651 = vld [vmem:[%s648 + $0x10] sm:$0xff]
    %v652 = vld [vmem:[%s648 + $0x18] sm:$0xff]
    %v654 = vsel %vm225, %v640, 0
    %v657 = vsel %vm225, %v645, 0
    %659 = vmatprep.subr.mxu0 0.0
    %660 = vmatpush1.msra.mxu0 %v649
    %661 = vmatprep.subr.mxu0 0.0
    %662 = vmatpush1.msra.mxu0 %v650
    %663 = vmatprep.subr.mxu0 0.0
    %664 = vmatpush1.msra.mxu0 %v651
    %665 = vmatprep.subr.mxu0 0.0
    %666 = vmatpush1.msra.mxu0 %v652
    %667 = vmatprep.subr.mxu0 0.0
    %668 = vmatpush1.msra.mxu0 0.0
    %669 = vmatprep.subr.mxu0 0.0
    %670 = vmatpush1.msra.mxu0 0.0
    %671 = vmatprep.subr.mxu0 0.0
    %672 = vmatpush1.msra.mxu0 0.0
    %673 = vmatprep.subr.mxu0 0.0
    %674 = vmatpush1.msra.mxu0 0.0
    %675 = vmatprep.subr.mxu0 0.0
    %676 = vmatpush1.msra.mxu0 0.0
    %677 = vmatprep.subr.mxu0 0.0
    %678 = vmatpush1.msra.mxu0 0.0
    %679 = vmatprep.subr.mxu0 0.0
    %680 = vmatpush1.msra.mxu0 0.0
    %681 = vmatprep.subr.mxu0 0.0
    %682 = vmatpush1.msra.mxu0 0.0
    %683 = vmatprep.subr.mxu0 0.0
    %684 = vmatpush1.msra.mxu0 0.0
    %685 = vmatprep.subr.mxu0 0.0
    %686 = vmatpush1.msra.mxu0 0.0
    %687 = vmatprep.subr.mxu0 0.0
    %688 = vmatpush1.msra.mxu0 0.0
    %689 = vmatprep.subr.mxu0 0.0
    %690 = vmatpush1.msra.mxu0 0.0
    %691 = vmatprep.subr.mxu0 0.0
    %692 = vmatpush1.msra.mxu0 0.0
    %693 = vmatprep.subr.mxu0 0.0
    %694 = vmatpush1.msra.mxu0 0.0
    %695 = vmatprep.subr.mxu0 0.0
    %696 = vmatpush1.msra.mxu0 0.0
    %697 = vmatprep.subr.mxu0 0.0
    %698 = vmatpush1.msra.mxu0 0.0
    %699 = vmatprep.subr.mxu0 0.0
    %700 = vmatpush1.msra.mxu0 0.0
    %701 = vmatprep.subr.mxu0 0.0
    %702 = vmatpush1.msra.mxu0 0.0
    %703 = vmatprep.subr.mxu0 0.0
    %704 = vmatpush1.msra.mxu0 0.0
    %705 = vmatprep.subr.mxu0 0.0
    %706 = vmatpush1.msra.mxu0 0.0
    %707 = vmatprep.subr.mxu0 0.0
    %708 = vmatpush1.msra.mxu0 0.0
    %709 = vmatprep.subr.mxu0 0.0
    %710 = vmatpush1.msra.mxu0 0.0
    %711 = vmatprep.subr.mxu0 0.0
    %712 = vmatpush1.msra.mxu0 0.0
    %713 = vmatprep.subr.mxu0 0.0
    %714 = vmatpush1.msra.mxu0 0.0
    %715 = vmatprep.subr.mxu0 0.0
    %716 = vmatpush1.msra.mxu0 0.0
    %717 = vmatprep.subr.mxu0 0.0
    %718 = vmatpush1.msra.mxu0 0.0
    %719 = vmatprep.subr.mxu0 0.0
    %720 = vmatpush1.msra.mxu0 0.0
    %721 = vmatprep.subr.mxu0 0.0
    %722 = vmatpush1.msra.mxu0 0.0
    %723 = vmatprep.mubr.f32.mxu0 0.0
    %724 = vmatmul.mubr.f32.gmra.mrb[0].mxu0 %v654
    %v725 = vpop.f32.mrb[0].mxu0
    %v726 = vadd.f32 0.0, %v725
    %v727 = vpop.f32.mrb[0].mxu0
    %728 = vmatprep.mubr.f32.mxu0 0.0
    %729 = vmatmul.mubr.f32.gmra.mrb[0].mxu0 %v657
    %v730 = vpop.f32.mrb[0].mxu0
    %v731 = vadd.f32 0.0, %v730
    %v732 = vpop.f32.mrb[0].mxu0
    %733 = vdwg.mxu0
    %v734 = vmax.f32 %v726, 0.0
    %v735 = vmax.f32 %v731, 0.0
    %v736 = vmax.f32 %v571, %v734
    %v737 = vmax.f32 %v572, %v735
    %v738 = vld [vmem:[%s5] sm:$0xff]
    %v739 = vld [vmem:[%s5 + $0x8] sm:$0xff]
    %v740 = vld [vmem:[%s5 + $0x10] sm:$0xff]
    %v741 = vld [vmem:[%s5 + $0x18] sm:$0xff]
    %v742 = vld [vmem:[%s5 + $0x20] sm:$0xff]
    %v743 = vld [vmem:[%s5 + $0x28] sm:$0xff]
    %v744 = vld [vmem:[%s5 + $0x30] sm:$0xff]
    %v745 = vld [vmem:[%s5 + $0x38] sm:$0xff]
    %v747 = vsel %vm225, %v399, 0
    %v750 = vsel %vm225, %v400, 0
    %752 = vmatprep.subr.mxu0 0.0
    %753 = vmatpush1.msra.mxu0 %v742
    %754 = vmatprep.subr.mxu0 0.0
    %755 = vmatpush1.msra.mxu0 %v743
    %756 = vmatprep.subr.mxu0 0.0
    %757 = vmatpush1.msra.mxu0 %v744
    %758 = vmatprep.subr.mxu0 0.0
    %759 = vmatpush1.msra.mxu0 %v745
    %760 = vmatprep.subr.mxu0 0.0
    %761 = vmatpush1.msra.mxu0 0.0
    %762 = vmatprep.subr.mxu0 0.0
    %763 = vmatpush1.msra.mxu0 0.0
    %764 = vmatprep.subr.mxu0 0.0
    %765 = vmatpush1.msra.mxu0 0.0
    %766 = vmatprep.subr.mxu0 0.0
    %767 = vmatpush1.msra.mxu0 0.0
    %768 = vmatprep.subr.mxu0 0.0
    %769 = vmatpush1.msra.mxu0 0.0
    %770 = vmatprep.subr.mxu0 0.0
    %771 = vmatpush1.msra.mxu0 0.0
    %772 = vmatprep.subr.mxu0 0.0
    %773 = vmatpush1.msra.mxu0 0.0
    %774 = vmatprep.subr.mxu0 0.0
    %775 = vmatpush1.msra.mxu0 0.0
    %776 = vmatprep.subr.mxu0 0.0
    %777 = vmatpush1.msra.mxu0 0.0
    %778 = vmatprep.subr.mxu0 0.0
    %779 = vmatpush1.msra.mxu0 0.0
    %780 = vmatprep.subr.mxu0 0.0
    %781 = vmatpush1.msra.mxu0 0.0
    %782 = vmatprep.subr.mxu0 0.0
    %783 = vmatpush1.msra.mxu0 0.0
    %784 = vmatprep.subr.mxu0 0.0
    %785 = vmatpush1.msra.mxu0 0.0
    %786 = vmatprep.subr.mxu0 0.0
    %787 = vmatpush1.msra.mxu0 0.0
    %788 = vmatprep.subr.mxu0 0.0
    %789 = vmatpush1.msra.mxu0 0.0
    %790 = vmatprep.subr.mxu0 0.0
    %791 = vmatpush1.msra.mxu0 0.0
    %792 = vmatprep.subr.mxu0 0.0
    %793 = vmatpush1.msra.mxu0 0.0
    %794 = vmatprep.subr.mxu0 0.0
    %795 = vmatpush1.msra.mxu0 0.0
    %796 = vmatprep.subr.mxu0 0.0
    %797 = vmatpush1.msra.mxu0 0.0
    %798 = vmatprep.subr.mxu0 0.0
    %799 = vmatpush1.msra.mxu0 0.0
    %800 = vmatprep.subr.mxu0 0.0
    %801 = vmatpush1.msra.mxu0 0.0
    %802 = vmatprep.subr.mxu0 0.0
    %803 = vmatpush1.msra.mxu0 0.0
    %804 = vmatprep.subr.mxu0 0.0
    %805 = vmatpush1.msra.mxu0 0.0
    %806 = vmatprep.subr.mxu0 0.0
    %807 = vmatpush1.msra.mxu0 0.0
    %808 = vmatprep.subr.mxu0 0.0
    %809 = vmatpush1.msra.mxu0 0.0
    %810 = vmatprep.subr.mxu0 0.0
    %811 = vmatpush1.msra.mxu0 0.0
    %812 = vmatprep.subr.mxu0 0.0
    %813 = vmatpush1.msra.mxu0 0.0
    %814 = vmatprep.subr.mxu0 0.0
    %815 = vmatpush1.msra.mxu0 0.0
    %816 = vmatprep.mubr.f32.mxu0 0.0
    %817 = vmatmul.mubr.f32.gmra.mrb[0].mxu0 %v747
    %v818 = vpop.f32.mrb[0].mxu0
    %v819 = vadd.f32 0.0, %v818
    %v820 = vpop.f32.mrb[0].mxu0
    %821 = vmatprep.mubr.f32.mxu0 0.0
    %822 = vmatmul.mubr.f32.gmra.mrb[0].mxu0 %v750
    %v823 = vpop.f32.mrb[0].mxu0
    %v824 = vadd.f32 0.0, %v823
    %v825 = vpop.f32.mrb[0].mxu0
    %826 = vdwg.mxu0
    %v828 = vsel %vm225, %v736, 0
    %v831 = vsel %vm225, %v737, 0
    %833 = vmatprep.subr.mxu0 0.0
    %834 = vmatpush1.msra.mxu0 %v738
    %835 = vmatprep.subr.mxu0 0.0
    %836 = vmatpush1.msra.mxu0 %v739
    %837 = vmatprep.subr.mxu0 0.0
    %838 = vmatpush1.msra.mxu0 %v740
    %839 = vmatprep.subr.mxu0 0.0
    %840 = vmatpush1.msra.mxu0 %v741
    %841 = vmatprep.subr.mxu0 0.0
    %842 = vmatpush1.msra.mxu0 0.0
    %843 = vmatprep.subr.mxu0 0.0
    %844 = vmatpush1.msra.mxu0 0.0
    %845 = vmatprep.subr.mxu0 0.0
    %846 = vmatpush1.msra.mxu0 0.0
    %847 = vmatprep.subr.mxu0 0.0
    %848 = vmatpush1.msra.mxu0 0.0
    %849 = vmatprep.subr.mxu0 0.0
    %850 = vmatpush1.msra.mxu0 0.0
    %851 = vmatprep.subr.mxu0 0.0
    %852 = vmatpush1.msra.mxu0 0.0
    %853 = vmatprep.subr.mxu0 0.0
    %854 = vmatpush1.msra.mxu0 0.0
    %855 = vmatprep.subr.mxu0 0.0
    %856 = vmatpush1.msra.mxu0 0.0
    %857 = vmatprep.subr.mxu0 0.0
    %858 = vmatpush1.msra.mxu0 0.0
    %859 = vmatprep.subr.mxu0 0.0
    %860 = vmatpush1.msra.mxu0 0.0
    %861 = vmatprep.subr.mxu0 0.0
    %862 = vmatpush1.msra.mxu0 0.0
    %863 = vmatprep.subr.mxu0 0.0
    %864 = vmatpush1.msra.mxu0 0.0
    %865 = vmatprep.subr.mxu0 0.0
    %866 = vmatpush1.msra.mxu0 0.0
    %867 = vmatprep.subr.mxu0 0.0
    %868 = vmatpush1.msra.mxu0 0.0
    %869 = vmatprep.subr.mxu0 0.0
    %870 = vmatpush1.msra.mxu0 0.0
    %871 = vmatprep.subr.mxu0 0.0
    %872 = vmatpush1.msra.mxu0 0.0
    %873 = vmatprep.subr.mxu0 0.0
    %874 = vmatpush1.msra.mxu0 0.0
    %875 = vmatprep.subr.mxu0 0.0
    %876 = vmatpush1.msra.mxu0 0.0
    %877 = vmatprep.subr.mxu0 0.0
    %878 = vmatpush1.msra.mxu0 0.0
    %879 = vmatprep.subr.mxu0 0.0
    %880 = vmatpush1.msra.mxu0 0.0
    %881 = vmatprep.subr.mxu0 0.0
    %882 = vmatpush1.msra.mxu0 0.0
    %883 = vmatprep.subr.mxu0 0.0
    %884 = vmatpush1.msra.mxu0 0.0
    %885 = vmatprep.subr.mxu0 0.0
    %886 = vmatpush1.msra.mxu0 0.0
    %887 = vmatprep.subr.mxu0 0.0
    %888 = vmatpush1.msra.mxu0 0.0
    %889 = vmatprep.subr.mxu0 0.0
    %890 = vmatpush1.msra.mxu0 0.0
    %891 = vmatprep.subr.mxu0 0.0
    %892 = vmatpush1.msra.mxu0 0.0
    %893 = vmatprep.subr.mxu0 0.0
    %894 = vmatpush1.msra.mxu0 0.0
    %895 = vmatprep.subr.mxu0 0.0
    %896 = vmatpush1.msra.mxu0 0.0
    %897 = vmatprep.mubr.f32.mxu0 0.0
    %898 = vmatmul.mubr.f32.gmra.mrb[0].mxu0 %v828
    %v899 = vpop.f32.mrb[0].mxu0
    %v900 = vadd.f32 %v819, %v899
    %v901 = vpop.f32.mrb[0].mxu0
    %902 = vmatprep.mubr.f32.mxu0 0.0
    %903 = vmatmul.mubr.f32.gmra.mrb[0].mxu0 %v831
    %v904 = vpop.f32.mrb[0].mxu0
    %v905 = vadd.f32 %v824, %v904
    %v906 = vpop.f32.mrb[0].mxu0
    %907 = vdwg.mxu0
    %v908 = vlaneseq
    %v909 = vshrl.u32 %v908, 7
    %v910 = vsub.s32 7, %v909
    %v911 = vrot.slane %v55, %v910
    %v912 = vadd.f32 %v900, %v911
    %v913 = vadd.f32 %v905, %v911
    %vm914 = vcmask 7168
    %915 = vst.msk [vmem:[%s6] sm:$0xff] %vm914, %v912
    %916 = vst.msk [vmem:[%s6 + $0x8] sm:$0xff] %vm914, %v913
    // Predicated region
    $region34: #{tpu_custom_call.1} parent=1 // pred_check
      _
    $region35: #{tpu_custom_call.1} parent=1 // pred_check_branch
      %918 = sbr.rel (0) target = $region37
    $region36: #{tpu_custom_call.1} parent=1 // pred_region
      _
    $region37: #{tpu_custom_call.1} parent=1 // pred_fallthru
      _
    // Predicated region
    $region38: #{tpu_custom_call.1} parent=1 // pred_check
      _
    $region39: #{tpu_custom_call.1} parent=1 // pred_check_branch
      %920 = sbr.rel (0) target = $region41
    $region40: #{tpu_custom_call.1} parent=1 // pred_region
      _
    $region41: #{tpu_custom_call.1} parent=1 // pred_fallthru
      _
    %921 = vsyncpa [#allocation3], 1
    %922 = vsyncpa [#allocation5], 1

</llo_original>
